<compile_context>
chip_gen: v6e
topology: v6e:2x2x1
jax: 0.10.0
libtpu: 0.0.40
codegen_flags: <defaults>
</compile_context>

<pallas_src>
import jax
import jax.numpy as jnp
from jax import lax
from jax.experimental import pallas as pl
from jax.experimental.pallas import tpu as pltpu


def _vmem_spec():
    # whole array resident in VMEM (demo shapes are tiny; no pipelining needed)
    return pl.BlockSpec(memory_space=pltpu.MemorySpace.VMEM)


# --------------------------- CnnBlock kernel --------------------------------
# BN1 (shift pre-add, scale folded) -> Conv1d(k=3,pad=1) as input-side im2col GEMM
# -> BN2 + conv-bias (folded into weights/bias) -> Hardtanh.  bf16 out.
def _cnn_kernel(x_ref, sh1_ref, wcat_ref, bias_ref, o_ref):
    T, B, F = x_ref.shape
    H = o_ref.shape[2]

    # BN1 shift applied per-frame BEFORE building the im2col so the zero-pad rows at the
    # time boundaries contribute exactly zero through the GEMM (scales are folded into wcat).
    xn = (x_ref[...].reshape(T * B, F) + sh1_ref[...]).astype(jnp.bfloat16)

    zf = jnp.zeros((B, F), jnp.bfloat16)
    xm1 = jnp.concatenate([zf, xn[:(T - 1) * B, :]], axis=0)   # frame t-1 (zero row at t=0)
    xp1 = jnp.concatenate([xn[B:, :], zf], axis=0)             # frame t+1 (zero row at t=T-1)
    cols = jnp.concatenate([xm1, xn, xp1], axis=1)             # (T*B, 3F) im2col

    y = jnp.dot(cols, wcat_ref[...], preferred_element_type=jnp.float32) + bias_ref[...]
    o_ref[...] = jnp.clip(y, -1.0, 1.0).astype(jnp.bfloat16).reshape(T, B, H)   # Hardtanh


def cnn_block(x_tbf, p):
    T, B, F = x_tbf.shape
    H = p["bias"].shape[1]
    return pl.pallas_call(
        _cnn_kernel,
        out_shape=jax.ShapeDtypeStruct((T, B, H), jnp.bfloat16),
        in_specs=[_vmem_spec()] * 4,
        out_specs=_vmem_spec(),
    )(x_tbf, p["shift1"], p["wcat"], p["bias"])


# --------------------------- BiRnnBlock (bidirectional LSTM) ----------------
def _bilstm_kernel(x_ref, wih_ref, whh_f_ref, whh_b_ref, bcat_ref, o_ref,
                   xpf_ref, xpb_ref):
    T, B, Din = x_ref.shape
    H = whh_f_ref.shape[0]
    H4 = 4 * H

    # 1) Hoisted input projection: one GEMM for both directions, bias folded in, bf16 scratch.
    xp = jnp.dot(x_ref[...].reshape(T * B, Din), wih_ref[...],
                 preferred_element_type=jnp.float32) + bcat_ref[...]   # (T*B, 8H)
    xpf_ref[...] = xp[:, :H4].astype(jnp.bfloat16).reshape(T, B, H4)
    xpb_ref[...] = xp[:, H4:].astype(jnp.bfloat16).reshape(T, B, H4)

    # hoist the recurrent weights out of the loop body
    whh_f = whh_f_ref[...]
    whh_b = whh_b_ref[...]

    def cell(pre, h, c, whh):
        # gate columns permuted at init to [i, f, o, g]: one sigmoid over a contiguous
        # (B, 3H) slice, one tanh over (B, H).
        g = pre + jnp.dot(h.astype(jnp.bfloat16), whh, preferred_element_type=jnp.float32)
        sg = jax.nn.sigmoid(g[:, :3 * H])
        i = sg[:, 0:H]
        f = sg[:, H:2 * H]
        o = sg[:, 2 * H:3 * H]
        gg = jnp.tanh(g[:, 3 * H:4 * H])
        c_new = f * c + i * gg
        return o * jnp.tanh(c_new), c_new

    # 2) Recurrence: only h @ Whh per step; fwd(t) and bwd(T-1-t) interleaved so the MXU push
    #    of one direction overlaps the VPU/EUP gate math of the other.  Hidden states are
    #    written straight into lane-slices of o_ref (no scratch, no final concatenate).
    def step(t, carry):
        h_f, c_f, h_b, c_b = carry
        tb = T - 1 - t
        h_f, c_f = cell(xpf_ref[t], h_f, c_f, whh_f)
        h_b, c_b = cell(xpb_ref[tb], h_b, c_b, whh_b)
        o_ref[t, :, :H] = h_f.astype(jnp.bfloat16)
        o_ref[tb, :, H:] = h_b.astype(jnp.bfloat16)
        return (h_f, c_f, h_b, c_b)

    z = jnp.zeros((B, H), jnp.float32)
    lax.fori_loop(0, T, step, (z, z, z, z))


def bilstm_layer(x_tbd, p):
    T, B, Din = x_tbd.shape
    H = p["whh_f"].shape[0]
    return pl.pallas_call(
        _bilstm_kernel,
        out_shape=jax.ShapeDtypeStruct((T, B, 2 * H), jnp.bfloat16),
        in_specs=[_vmem_spec()] * 5,
        out_specs=_vmem_spec(),
        scratch_shapes=[
            pltpu.VMEM((T, B, 4 * H), jnp.bfloat16),   # fwd input projections (bf16)
            pltpu.VMEM((T, B, 4 * H), jnp.bfloat16),   # bwd input projections (bf16)
        ],
    )(x_tbd, p["wih"], p["whh_f"], p["whh_b"], p["bcat"])


# --------------------------- classifier -------------------------------------
def _linear_kernel(x_ref, w_ref, b_ref, o_ref):
    o_ref[...] = (jnp.dot(x_ref[...], w_ref[...],
                          preferred_element_type=jnp.float32) + b_ref[...])


def classifier(x_2d, p):
    """Returns lane-padded (M, Vp) f32 logits (Vp = vocab rounded up to 128)."""
    M, K = x_2d.shape
    Vp = p["w"].shape[1]
    tm = M
    for cand in (512, 256, 128, 64, 32, 16, 8):
        if M >= cand:
            tm = cand
            break
    grid = (pl.cdiv(M, tm),)   # cdiv grid; tail block is masked, tm need not divide M
    return pl.pallas_call(
        _linear_kernel,
        out_shape=jax.ShapeDtypeStruct((M, Vp), jnp.float32),
        grid=grid,
        in_specs=[pl.BlockSpec((tm, K), lambda i: (i, 0)),
                  pl.BlockSpec((K, Vp), lambda i: (0, 0)),
                  pl.BlockSpec((1, Vp), lambda i: (0, 0))],
        out_specs=pl.BlockSpec((tm, Vp), lambda i: (i, 0)),
        compiler_params=pltpu.CompilerParams(dimension_semantics=("parallel",)),
    )(x_2d, p["w"], p["b"])


# --------------------------- parameter init (deterministic) -----------------
def init_params(key, input_size, hidden_size, vocab_size, nlayers):
    F, H, V = input_size, hidden_size, vocab_size
    eps = 1e-5
    keys = jax.random.split(key, 4 + nlayers)

    # ---- CnnBlock: BN1 -> Conv1d(F->H, k=3, pad=1) -> BN2 -> Hardtanh (all constants folded)
    # BN (eval): y = x*s + b with s = gamma/sqrt(var+eps), b = beta - mean*s.
    s1 = jnp.ones((F,), jnp.float32) / jnp.sqrt(1.0 + eps)
    b1 = jnp.zeros((F,), jnp.float32)
    s2 = jnp.ones((H,), jnp.float32) / jnp.sqrt(1.0 + eps)
    b2 = jnp.zeros((H,), jnp.float32)
    fan_in = F * 3
    wconv = jax.random.normal(keys[0], (H, F, 3), jnp.float32) * jnp.sqrt(2.0 / fan_in)
    bound = 1.0 / jnp.sqrt(float(fan_in))
    cbias = jax.random.uniform(keys[1], (H,), jnp.float32, -bound, bound)

    # Fold BN1 scale into the weight rows and BN2 scale into the weight columns.  The BN1
    # SHIFT stays as a pre-GEMM add (shift1 = b1/s1) so that the conv's zero-padded boundary
    # frames contribute exactly zero -- do NOT fold it into the bias.
    w_eff = wconv * s1[None, :, None] * s2[:, None, None]                  # (H, F, 3)
    wcat = jnp.concatenate([w_eff[:, :, 0].T, w_eff[:, :, 1].T, w_eff[:, :, 2].T],
                           axis=0)                                          # (3F, H)
    cnn = dict(
        shift1=(b1 / s1).reshape(1, F),
        wcat=wcat.astype(jnp.bfloat16),
        bias=(cbias * s2 + b2).reshape(1, H),
    )

    # ---- BiLSTM layers --------------------------------------------------------------------
    def gate_perm(w):
        # PyTorch gate row order [i, f, g, o] -> kernel order [i, f, o, g]
        return jnp.concatenate([w[:H], w[H:2 * H], w[3 * H:4 * H], w[2 * H:3 * H]], axis=0)

    rnn_p = []
    k = 1.0 / jnp.sqrt(float(H))
    for l in range(nlayers):
        din = H if l == 0 else 2 * H
        lk = jax.random.split(keys[2 + l], 8)

        def u(kk, shape):
            return jax.random.uniform(kk, shape, jnp.float32, -k, k)

        per_dir = {}
        for d, tag in enumerate(("f", "b")):
            wih = gate_perm(u(lk[4 * d + 0], (4 * H, din)))
            whh = gate_perm(u(lk[4 * d + 1], (4 * H, H)))
            bih = gate_perm(u(lk[4 * d + 2], (4 * H,)))
            bhh = gate_perm(u(lk[4 * d + 3], (4 * H,)))
            per_dir[f"wih_{tag}"] = wih.T                              # (din, 4H)
            per_dir[f"whh_{tag}"] = whh.T.astype(jnp.bfloat16)         # (H, 4H)
            per_dir[f"b_{tag}"] = (bih + bhh).reshape(1, 4 * H)
        rnn_p.append(dict(
            wih=jnp.concatenate([per_dir["wih_f"], per_dir["wih_b"]],
                                axis=1).astype(jnp.bfloat16),          # (din, 8H)
            whh_f=per_dir["whh_f"], whh_b=per_dir["whh_b"],
            bcat=jnp.concatenate([per_dir["b_f"], per_dir["b_b"]], axis=1),  # (1, 8H)
        ))

    # ---- Linear(2H -> V); bias = phoneme prior (PHONEME_PRIOR external in the original,
    # replaced by a deterministic uniform prior 1/V).  Vocab padded to a multiple of 128 so
    # classifier stores stay lane-dense.
    kb = 1.0 / jnp.sqrt(float(2 * H))
    wcls = jax.random.uniform(keys[2 + nlayers], (V, 2 * H), jnp.float32, -kb, kb)
    phoneme_prior = jnp.full((V,), 1.0 / V, dtype=jnp.float32)
    Vp = ((V + 127) // 128) * 128
    w_pad = jnp.zeros((2 * H, Vp), jnp.float32).at[:, :V].set(wcls.T)
    b_pad = jnp.zeros((1, Vp), jnp.float32).at[0, :V].set(phoneme_prior)
    cls = dict(w=w_pad.astype(jnp.bfloat16), b=b_pad, v=V)
    return dict(cnn=cnn, rnn=rnn_p, cls=cls)


# --------------------------- full forward -----------------------------------
def speech_recognizer2(seq, seq_len, params, train=False):
    # seq: (T, B, F) float32, same as the PyTorch module's `seq` argument.
    T, B, F = seq.shape
    del seq_len  # all lengths == T in this synthetic setting (pack/pad are identities)
    out = cnn_block(seq, params["cnn"])            # (T, B, H) bf16, no layout transposes
    # LockedDropout(dropout_i / dropout_h / dropout) is identity on the eval path.
    for layer_params in params["rnn"]:
        out = bilstm_layer(out, layer_params)      # (T, B, 2H) bf16
    logits = classifier(out.reshape(T * B, -1), params["cls"])   # (T*B, Vp) f32, lane-padded
    V = params["cls"]["v"]
    # NOTE: a fused downstream loss should consume the lane-padded logits directly; this
    # slice exists only to match the module's (T, B, V) output contract.
    return logits[:, :V].reshape(T, B, V)


if __name__ == "__main__":
    # B multiple of 8 and H multiple of 128 so every vector op / store is (8,128)-tile dense.
    T, B, F, H, V, L = 8, 8, 16, 128, 16, 2
    key = jax.random.PRNGKey(0)
    kx, kp = jax.random.split(key)
    seq = jax.random.normal(kx, (T, B, F), dtype=jnp.float32)
    seq_len = jnp.full((B,), T, dtype=jnp.int32)
    params = init_params(kp, F, H, V, L)
    out = speech_recognizer2(seq, seq_len, params, train=False)
    jax.block_until_ready(out)
    assert out.shape == (T, B, V) and out.dtype == jnp.float32
    print("KERNEL_OK")
</pallas_src>

<mosaic_0001>
module attributes {stable_mosaic.version = 11 : i64} {
  func.func @_cnn_kernel(%arg0: memref<8x8x16xf32, #tpu.memory_space<vmem>>, %arg1: memref<1x16xf32, #tpu.memory_space<vmem>>, %arg2: memref<48x128xbf16, #tpu.memory_space<vmem>>, %arg3: memref<1x128xf32, #tpu.memory_space<vmem>>, %arg4: memref<8x8x128xbf16, #tpu.memory_space<vmem>>) attributes {dimension_semantics = [], scalar_prefetch = 0 : i64, scratch_operands = 0 : i64, tpu.core_type = #tpu.core_type<tc>} {
    %c0 = arith.constant 0 : index
    %c0_0 = arith.constant 0 : index
    %c0_1 = arith.constant 0 : index
    %0 = vector.load %arg0[%c0, %c0_0, %c0_1] : memref<8x8x16xf32, #tpu.memory_space<vmem>>, vector<8x8x16xf32>
    %1 = vector.shape_cast %0 : vector<8x8x16xf32> to vector<64x16xf32>
    %c0_2 = arith.constant 0 : index
    %c0_3 = arith.constant 0 : index
    %2 = vector.load %arg1[%c0_2, %c0_3] : memref<1x16xf32, #tpu.memory_space<vmem>>, vector<1x16xf32>
    %3 = vector.broadcast %2 : vector<1x16xf32> to vector<64x16xf32>
    %4 = arith.addf %1, %3 : vector<64x16xf32>
    %5 = arith.truncf %4 : vector<64x16xf32> to vector<64x16xbf16>
    %cst = arith.constant 0.000000e+00 : bf16
    %6 = vector.broadcast %cst : bf16 to vector<8x16xbf16>
    %7 = vector.extract_strided_slice %5 {offsets = [0, 0], sizes = [56, 16], strides = [1, 1]} : vector<64x16xbf16> to vector<56x16xbf16>
    %8 = tpu.concatenate %6, %7 in 0 : vector<8x16xbf16>, vector<56x16xbf16> -> vector<64x16xbf16>
    %9 = vector.extract_strided_slice %5 {offsets = [8, 0], sizes = [56, 16], strides = [1, 1]} : vector<64x16xbf16> to vector<56x16xbf16>
    %10 = tpu.concatenate %9, %6 in 0 : vector<56x16xbf16>, vector<8x16xbf16> -> vector<64x16xbf16>
    %11 = tpu.concatenate %8, %5, %10 in 1 : vector<64x16xbf16>, vector<64x16xbf16>, vector<64x16xbf16> -> vector<64x48xbf16>
    %c0_4 = arith.constant 0 : index
    %c0_5 = arith.constant 0 : index
    %12 = vector.load %arg2[%c0_4, %c0_5] : memref<48x128xbf16, #tpu.memory_space<vmem>>, vector<48x128xbf16>
    %cst_6 = arith.constant dense<0.000000e+00> : vector<64x128xf32>
    %13 = tpu.matmul %11, %12, %cst_6 {dimension_numbers = #tpu.dot_dimension_numbers<[1], [0], [0], [1], [0, 0, 1, 1], [], []>} : vector<64x48xbf16>, vector<48x128xbf16>, vector<64x128xf32> -> vector<64x128xf32>
    %c0_7 = arith.constant 0 : index
    %c0_8 = arith.constant 0 : index
    %14 = vector.load %arg3[%c0_7, %c0_8] : memref<1x128xf32, #tpu.memory_space<vmem>>, vector<1x128xf32>
    %15 = vector.broadcast %14 : vector<1x128xf32> to vector<64x128xf32>
    %16 = arith.addf %13, %15 : vector<64x128xf32>
    %cst_9 = arith.constant -1.000000e+00 : f32
    %cst_10 = arith.constant 1.000000e+00 : f32
    %17 = vector.broadcast %cst_9 : f32 to vector<64x128xf32>
    %18 = arith.maximumf %17, %16 : vector<64x128xf32>
    %19 = vector.broadcast %cst_10 : f32 to vector<64x128xf32>
    %20 = arith.minimumf %19, %18 : vector<64x128xf32>
    %21 = arith.truncf %20 : vector<64x128xf32> to vector<64x128xbf16>
    %22 = vector.shape_cast %21 : vector<64x128xbf16> to vector<8x8x128xbf16>
    %c0_11 = arith.constant 0 : index
    %c0_12 = arith.constant 0 : index
    %c0_13 = arith.constant 0 : index
    %23 = vector.load %arg4[%c0_11, %c0_12, %c0_13] : memref<8x8x128xbf16, #tpu.memory_space<vmem>>, vector<8x8x128xbf16>
    tpu.vector_store %arg4[%c0_11, %c0_12, %c0_13], %22 {strides = array<i32>} : memref<8x8x128xbf16, #tpu.memory_space<vmem>>, vector<8x8x128xbf16>,
    return
  }
}

</mosaic_0001>

<llo_original>
// kernel: tpu_custom_call.1
$region0: #{tpu_custom_call.1}
  #allocation0 [shape = 'u32[]', space=smem, size = 0x4, offset = 0x4, fixed_abs, tag = 'smem constant byte address 0x4 - core index']
  #allocation1 [shape = 'u32[144,128]{1,0:T(1,128)}', space=vmem, size = 0x12000, scoped, tag = 'internal scratch']
  %s0 = inlined_call_operand.hbm [shape: f32[8,8,16], index: 0, kind: input, shape index: {}]
  %s1 = inlined_call_operand.vmem [shape: f32[1,16], index: 1, kind: input, shape index: {}]
  %s2 = inlined_call_operand.hbm [shape: bf16[48,128], index: 2, kind: input, shape index: {}]
  %s3 = inlined_call_operand.vmem [shape: f32[1,128], index: 3, kind: input, shape index: {}]
  %s4 = inlined_call_operand.hbm [shape: bf16[8,8,128], index: 4, kind: output, shape index: {}]
  %s5 = sld [smem:[#allocation0]]
  $region34: #{tpu_custom_call.1} parent=0
    _
  %s7 = ssub.s32 1, %s5
  %s8 = scalar_select 0, %s7, %s5
  $region1: #{tpu_custom_call.1} parent=0
    #allocation2 [shape = 'u8[32768]{0}', space=vmem, size = 0x8000, scoped, tag = 'input window, operand 0, single buffered']
    #allocation3 [shape = 's32[1]{0}', space=sflag, size = 0x4, scoped, tag = 'scoped memory for tpu_custom_call.1']
    #allocation4 [shape = 's32[1]{0}', space=sflag, size = 0x4, scoped, tag = 'scoped memory for tpu_custom_call.1']
    #allocation5 [shape = 'u8[12288]{0}', space=vmem, size = 0x3000, scoped, tag = 'input window, operand 2, single buffered']
    #allocation6 [shape = 's32[1]{0}', space=sflag, size = 0x4, scoped, tag = 'scoped memory for tpu_custom_call.1']
    #allocation7 [shape = 'u8[16384]{0}', space=vmem, size = 0x4000, scoped, tag = 'output window, operand 0, single buffered']
    %9 = vsyncpa [#allocation3], 0
    %10 = vsyncpa [#allocation6], 0
    %11 = vsyncpa [#allocation4], 0
    // Predicated region
    $region2: #{tpu_custom_call.1} parent=1 // pred_check
      _
    $region3: #{tpu_custom_call.1} parent=1 // pred_check_branch
      %13 = sbr.rel (0) target = $region5
    $region4: #{tpu_custom_call.1} parent=1 // pred_region
      %s15 = ssub.s32 1024, 1024
      %16 = vsyncadd [#allocation3], %s15
      %s17 = sshll.u32 [#allocation2], 4
      %s18 = int_to_ptr.vmem [resolvable:$true] %s17
      %23 = dma.hbm_to_vmem [thread:$0]  %s0, 1024, %s18, [#allocation3], 128, 128, 8
    $region5: #{tpu_custom_call.1} parent=1 // pred_fallthru
      _
    // Predicated region
    $region6: #{tpu_custom_call.1} parent=1 // pred_check
      _
    $region7: #{tpu_custom_call.1} parent=1 // pred_check_branch
      %25 = sbr.rel (0) target = $region9
    $region8: #{tpu_custom_call.1} parent=1 // pred_region
      _
    $region9: #{tpu_custom_call.1} parent=1 // pred_fallthru
      _
    // Predicated region
    $region10: #{tpu_custom_call.1} parent=1 // pred_check
      _
    $region11: #{tpu_custom_call.1} parent=1 // pred_check_branch
      %27 = sbr.rel (0) target = $region13
    $region12: #{tpu_custom_call.1} parent=1 // pred_region
      %s29 = ssub.s32 384, 384
      %30 = vsyncadd [#allocation6], %s29
      %s31 = sshll.u32 [#allocation5], 4
      %s32 = int_to_ptr.vmem [resolvable:$true] %s31
      %37 = dma.hbm_to_vmem [thread:$0]  %s2, 384, %s32, [#allocation6], 64, 64, 4
    $region13: #{tpu_custom_call.1} parent=1 // pred_fallthru
      _
    // Predicated region
    $region14: #{tpu_custom_call.1} parent=1 // pred_check
      _
    $region15: #{tpu_custom_call.1} parent=1 // pred_check_branch
      %39 = sbr.rel (0) target = $region17
    $region16: #{tpu_custom_call.1} parent=1 // pred_region
      _
    $region17: #{tpu_custom_call.1} parent=1 // pred_fallthru
      _
    // Predicated region
    $region18: #{tpu_custom_call.1} parent=1 // pred_check
      _
    $region19: #{tpu_custom_call.1} parent=1 // pred_check_branch
      %41 = sbr.rel (0) target = $region21
    $region20: #{tpu_custom_call.1} parent=1 // pred_region
      %42 = dma.done [#allocation3], 1024
    $region21: #{tpu_custom_call.1} parent=1 // pred_fallthru
      _
    // Predicated region
    $region22: #{tpu_custom_call.1} parent=1 // pred_check
      _
    $region23: #{tpu_custom_call.1} parent=1 // pred_check_branch
      %44 = sbr.rel (0) target = $region25
    $region24: #{tpu_custom_call.1} parent=1 // pred_region
      %45 = dma.done [#allocation6], 384
    $region25: #{tpu_custom_call.1} parent=1 // pred_fallthru
      _
    %v47 = vld [vmem:[#allocation2] sm:$0xff]
    %v48 = vld [vmem:[#allocation2 + $0x8] sm:$0xff]
    %v49 = vld [vmem:[#allocation2 + $0x10] sm:$0xff]
    %v50 = vld [vmem:[#allocation2 + $0x18] sm:$0xff]
    %v51 = vld [vmem:[#allocation2 + $0x20] sm:$0xff]
    %v52 = vld [vmem:[#allocation2 + $0x28] sm:$0xff]
    %v53 = vld [vmem:[#allocation2 + $0x30] sm:$0xff]
    %v54 = vld [vmem:[#allocation2 + $0x38] sm:$0xff]
    %v55 = vld [vmem:[%s1] sm:$0x1]
    %v57 = vlaneseq
    %v58 = vshrl.u32 %v57, 7
    %v59 = vsub.s32 0, %v58
    %v60 = vrot.slane %v55, %v59
    %v62 = vadd.f32 %v47, %v60
    %v63 = vadd.f32 %v48, %v60
    %v64 = vadd.f32 %v49, %v60
    %v65 = vadd.f32 %v50, %v60
    %v66 = vadd.f32 %v51, %v60
    %v67 = vadd.f32 %v52, %v60
    %v68 = vadd.f32 %v53, %v60
    %v69 = vadd.f32 %v54, %v60
    %v70 = vpack.c.bf16 %v63, %v62
    %v71 = vpack.c.bf16 %v65, %v64
    %v72 = vpack.c.bf16 %v67, %v66
    %v73 = vpack.c.bf16 %v69, %v68
    %vm78 = vcmask 1043456
    %v79 = vrot.slane %v70, 4
    %v80 = vrot.slane %v71, 4
    %v81 = vsel %vm78, %v79, %v80
    %v82 = vrot.slane %v72, 4
    %v83 = vsel %vm78, %v80, %v82
    %v84 = vrot.slane %v73, 4
    %v85 = vsel %vm78, %v82, %v84
    %vm86 = vcmask 1043456
    %v89 = vsel %vm86, 0, %v79
    %v91 = vsel %vm86, %v84, 0
    %92 = vrot.lane.b32.xlu0 %v70, 16
    %v93 = vpop.permute.xlu0 %92
    %94 = vrot.lane.b32.xlu0 %v71, 16
    %v95 = vpop.permute.xlu0 %94
    %96 = vrot.lane.b32.xlu0 %v72, 16
    %v97 = vpop.permute.xlu0 %96
    %98 = vrot.lane.b32.xlu0 %v73, 16
    %v99 = vpop.permute.xlu0 %98
    %101 = vrot.lane.b32.xlu0 %v81, 32
    %v102 = vpop.permute.xlu0 %101
    %103 = vrot.lane.b32.xlu0 %v83, 32
    %v104 = vpop.permute.xlu0 %103
    %105 = vrot.lane.b32.xlu0 %v85, 32
    %v106 = vpop.permute.xlu0 %105
    %107 = vrot.lane.b32.xlu0 %v91, 32
    %v108 = vpop.permute.xlu0 %107
    %vm109 = vcmask 130048
    %v111 = vsel %vm109, %v89, %v93
    %v114 = vsel %vm109, %v81, %v95
    %v117 = vsel %vm109, %v83, %v97
    %v120 = vsel %vm109, %v85, %v99
    %vm121 = vcmask 261120
    %v123 = vsel %vm121, %v111, %v102
    %v125 = vsel %vm121, %v114, %v104
    %v127 = vsel %vm121, %v117, %v106
    %v129 = vsel %vm121, %v120, %v108
    %v130 = vld [vmem:[#allocation5] sm:$0xf]
    %v131 = vld [vmem:[#allocation5 + $0x4] sm:$0xf]
    %v132 = vld [vmem:[#allocation5 + $0x8] sm:$0xf]
    %v133 = vld [vmem:[#allocation5 + $0xc] sm:$0xf]
    %v134 = vld [vmem:[#allocation5 + $0x10] sm:$0xf]
    %v135 = vld [vmem:[#allocation5 + $0x14] sm:$0xf]
    %v136 = vld [vmem:[%s3] sm:$0x1]
    %v138 = vlaneseq
    %v139 = vshrl.u32 %v138, 7
    %v140 = vsub.s32 0, %v139
    %v141 = vrot.slane %v136, %v140
    %v149 = vunpack.c.l.b16 %v130
    %v150 = vunpack.c.l.b16 %v131
    %v151 = vunpack.c.l.b16 %v132
    %v152 = vunpack.c.l.b16 %v133
    %v153 = vunpack.c.l.b16 %v134
    %v154 = vunpack.c.l.b16 %v135
    %v155 = vpack.c.b16 %v150, %v149
    %v156 = vpack.c.b16 %v152, %v151
    %v157 = vpack.c.b16 %v154, %v153
    %vm161 = vcmask 392192
    %v162 = vsel %vm161, %v123, 0
    %v164 = vsel %vm161, %v125, 0
    %v166 = vsel %vm161, %v127, 0
    %v168 = vsel %vm161, %v129, 0
    %170 = vmatprep.subr.bf16.mxu0 0
    %171 = vmatpush1.bf16.msra.mxu0 0
    %172 = vmatprep.subr.bf16.mxu0 0
    %173 = vmatpush1.bf16.msra.mxu0 0
    %174 = vmatprep.subr.bf16.mxu0 0
    %175 = vmatpush1.bf16.msra.mxu0 0
    %176 = vmatprep.subr.bf16.mxu0 0
    %177 = vmatpush1.bf16.msra.mxu0 0
    %178 = vmatprep.subr.bf16.mxu0 0
    %179 = vmatpush1.bf16.msra.mxu0 0
    %180 = vmatprep.subr.bf16.mxu0 0
    %181 = vmatpush1.bf16.msra.mxu0 %v157
    %182 = vmatprep.subr.bf16.mxu0 0
    %183 = vmatpush1.bf16.msra.mxu0 %v156
    %184 = vmatprep.subr.bf16.mxu0 0
    %185 = vmatpush1.bf16.msra.mxu0 %v155
    %186 = vmatprep.subr.bf16.mxu0 0
    %187 = vmatpush2.bf16.msra.mxu0 0
    %188 = vmatprep.subr.bf16.mxu0 0
    %189 = vmatpush2.bf16.msra.mxu0 0
    %190 = vmatprep.subr.bf16.mxu0 0
    %191 = vmatpush2.bf16.msra.mxu0 0
    %192 = vmatprep.subr.bf16.mxu0 0
    %193 = vmatpush2.bf16.msra.mxu0 0
    %194 = vmatprep.subr.bf16.mxu0 0
    %195 = vmatpush2.bf16.msra.mxu0 0
    %196 = vmatprep.subr.bf16.mxu0 0
    %197 = vmatpush2.bf16.msra.mxu0 0
    %198 = vmatprep.subr.bf16.mxu0 0
    %199 = vmatpush2.bf16.msra.mxu0 0
    %200 = vmatprep.subr.bf16.mxu0 0
    %201 = vmatpush2.bf16.msra.mxu0 0
    %202 = vmatprep.mubr.bf16.mxu0 0
    %203 = vmatmul.mubr.bf16.gmra.mxu0 %v162
    %v204 = vpop.f32.mrf.mxu0
    %v205 = vadd.f32 %v141, %v204
    %v206 = vpop.f32.mrf.mxu0
    %v207 = vpop.f32.mrf.mxu0
    %v208 = vadd.f32 %v141, %v207
    %v209 = vpop.f32.mrf.mxu0
    %210 = vmatprep.mubr.bf16.mxu0 0
    %211 = vmatmul.mubr.bf16.gmra.mxu0 %v164
    %v212 = vpop.f32.mrf.mxu0
    %v213 = vadd.f32 %v141, %v212
    %v214 = vpop.f32.mrf.mxu0
    %v215 = vpop.f32.mrf.mxu0
    %v216 = vadd.f32 %v141, %v215
    %v217 = vpop.f32.mrf.mxu0
    %218 = vmatprep.mubr.bf16.mxu0 0
    %219 = vmatmul.mubr.bf16.gmra.mxu0 %v166
    %v220 = vpop.f32.mrf.mxu0
    %v221 = vadd.f32 %v141, %v220
    %v222 = vpop.f32.mrf.mxu0
    %v223 = vpop.f32.mrf.mxu0
    %v224 = vadd.f32 %v141, %v223
    %v225 = vpop.f32.mrf.mxu0
    %226 = vmatprep.mubr.bf16.mxu0 0
    %227 = vmatmul.mubr.bf16.gmra.mxu0 %v168
    %v228 = vpop.f32.mrf.mxu0
    %v229 = vadd.f32 %v141, %v228
    %v230 = vpop.f32.mrf.mxu0
    %v231 = vpop.f32.mrf.mxu0
    %v232 = vadd.f32 %v141, %v231
    %v233 = vpop.f32.mrf.mxu0
    %234 = vdwg.mxu0
    %v235 = vmax.f32 %v205, -1.0
    %v236 = vmax.f32 %v208, -1.0
    %v237 = vmax.f32 %v213, -1.0
    %v238 = vmax.f32 %v216, -1.0
    %v239 = vmax.f32 %v221, -1.0
    %v240 = vmax.f32 %v224, -1.0
    %v241 = vmax.f32 %v229, -1.0
    %v242 = vmax.f32 %v232, -1.0
    %v243 = vmin.f32 %v235, 1.0
    %v244 = vmin.f32 %v236, 1.0
    %v245 = vmin.f32 %v237, 1.0
    %v246 = vmin.f32 %v238, 1.0
    %v247 = vmin.f32 %v239, 1.0
    %v248 = vmin.f32 %v240, 1.0
    %v249 = vmin.f32 %v241, 1.0
    %v250 = vmin.f32 %v242, 1.0
    %v251 = vpack.c.bf16 %v244, %v243
    %v252 = vpack.c.bf16 %v246, %v245
    %v253 = vpack.c.bf16 %v248, %v247
    %v254 = vpack.c.bf16 %v250, %v249
    %v259 = vunpack.c.l.b16 %v251
    %v260 = vunpack.c.h.b16 %v251
    %v261 = vunpack.c.l.b16 %v252
    %v262 = vunpack.c.h.b16 %v252
    %v263 = vunpack.c.l.b16 %v253
    %v264 = vunpack.c.h.b16 %v253
    %v265 = vunpack.c.l.b16 %v254
    %v266 = vunpack.c.h.b16 %v254
    %v267 = vpack.c.b16 %v259, %v259
    %v268 = vpack.c.b16 %v260, %v260
    %v269 = vpack.c.b16 %v261, %v261
    %v270 = vpack.c.b16 %v262, %v262
    %v271 = vpack.c.b16 %v263, %v263
    %v272 = vpack.c.b16 %v264, %v264
    %v273 = vpack.c.b16 %v265, %v265
    %v274 = vpack.c.b16 %v266, %v266
    %283 = vst [vmem:[#allocation7] sm:$0xf] %v267
    %284 = vst [vmem:[#allocation7 + $0x4] sm:$0xf] %v268
    %285 = vst [vmem:[#allocation7 + $0x8] sm:$0xf] %v269
    %286 = vst [vmem:[#allocation7 + $0xc] sm:$0xf] %v270
    %287 = vst [vmem:[#allocation7 + $0x10] sm:$0xf] %v271
    %288 = vst [vmem:[#allocation7 + $0x14] sm:$0xf] %v272
    %289 = vst [vmem:[#allocation7 + $0x18] sm:$0xf] %v273
    %290 = vst [vmem:[#allocation7 + $0x1c] sm:$0xf] %v274
    // Predicated region
    $region26: #{tpu_custom_call.1} parent=1 // pred_check
      _
    $region27: #{tpu_custom_call.1} parent=1 // pred_check_branch
      %292 = sbr.rel (0) target = $region29
    $region28: #{tpu_custom_call.1} parent=1 // pred_region
      %s294 = ssub.s32 512, 512
      %295 = vsyncadd [#allocation4], %s294
      %s296 = sshll.u32 [#allocation7], 4
      %s297 = int_to_ptr.vmem [resolvable:$true] %s296
      %302 = dma.vmem_to_hbm [thread:$0]  %s297, 512, %s4, [#allocation4], 64, 64, 4
    $region29: #{tpu_custom_call.1} parent=1 // pred_fallthru
      _
    // Predicated region
    $region30: #{tpu_custom_call.1} parent=1 // pred_check
      _
    $region31: #{tpu_custom_call.1} parent=1 // pred_check_branch
      %304 = sbr.rel (0) target = $region33
    $region32: #{tpu_custom_call.1} parent=1 // pred_region
      %305 = dma.done [#allocation4], 512
    $region33: #{tpu_custom_call.1} parent=1 // pred_fallthru
      _
    %306 = vsyncpa [#allocation3], 1
    %307 = vsyncpa [#allocation6], 1
    %308 = vsyncpa [#allocation4], 1

</llo_original>
